<compile_context>
chip_gen: v7x
topology: tpu7x:2x2x1
jax: 0.10.0
libtpu: 0.0.40
codegen_flags: <defaults>
</compile_context>

<pallas_src>
import functools

import jax
import jax.numpy as jnp
from jax.experimental import pallas as pl
from jax.experimental.pallas import tpu as pltpu


# ----------------------------------------------------------------------------
# Packed-parameter layout (all sections start at an 8-aligned sublane offset)
# ----------------------------------------------------------------------------
def _round8(n):
    return (n + 7) // 8 * 8


def _param_layout(H, A):
    """Ordered sections of the packed (R, W) f32 parameter buffer."""
    assert A + 1 <= 128, "merged actor/critic head assumes num_actions + 1 <= 128"
    W = max(128, 4 * H)          # slab lane width (widest section: 4H gate blocks)
    W_HEAD = 128                 # merged actor/critic head width (lane-dense)
    sections = [
        ("w1",     9,       64),       # encoder.0 weight  (9, 64)
        ("b1",     1,       64),       # encoder.0 bias
        ("w2",     64,      128),      # encoder.2 weight  (64, 128)
        ("b2",     1,       128),      # encoder.2 bias
        ("wih_f",  128,     4 * H),    # W_ih rows for encoder features
        ("wih_ar", A + 1,   4 * H),    # W_ih rows for prev-action | prev-reward
        ("whh",    H,       4 * H),    # W_hh (transposed)
        ("b_g",    1,       4 * H),    # b_ih + b_hh
        ("wac",    H,       W_HEAD),   # [actor | critic] weight, zero-padded lanes
        ("bac",    1,       W_HEAD),   # [actor | critic] bias,   zero-padded lanes
    ]
    layout = {}
    r = 0
    for name, nr, nc in sections:
        layout[name] = (r, nr, nc)
        r += _round8(nr)
    return sections, layout, r, W, W_HEAD


def pack_params(params):
    """Pack all weights into ONE (R, W) f32 slab.  Call once per parameter sync
    and reuse the result across forward calls (review item: cache packing)."""
    H = params["whh"].shape[0]
    A = params["wa"].shape[1]
    sections, layout, R, W, W_HEAD = _param_layout(H, A)
    blocks = {
        "w1": params["w1"], "b1": params["b1"],
        "w2": params["w2"], "b2": params["b2"],
        "wih_f": params["wih_f"],
        "wih_ar": jnp.concatenate([params["wih_a"], params["wih_r"]], axis=0),
        "whh": params["whh"], "b_g": params["b_g"],
        "wac": jnp.concatenate([params["wa"], params["wc"]], axis=1),
        "bac": jnp.concatenate([params["ba"], params["bc"]], axis=1),
    }
    slabs = []
    for name, nr, nc in sections:
        a = blocks[name].astype(jnp.float32)
        slabs.append(jnp.pad(a, ((0, _round8(nr) - a.shape[0]),
                                 (0, W - a.shape[1]))))
    packed = jnp.concatenate(slabs, axis=0)                       # (R, W)
    meta = dict(layout=layout, H=H, A=A, R=R, W=W, W_HEAD=W_HEAD)
    return packed, meta


# ----------------------------------------------------------------------------
# Pallas kernel: full forward pass (encoder, unrolled LSTM, merged heads)
# ----------------------------------------------------------------------------
def a3c_lstm_kernel(data_ref, p_ref, out_ref, hseq_sc, *, S, H, A, layout):
    bf16 = jnp.bfloat16

    def sec(name):
        r0, nr, nc = layout[name]
        return p_ref[r0:r0 + nr, 0:nc]

    data = data_ref[...]                         # (S+2, W_in)
    obs = data[0:S, 0:9]
    p_in = data[0:S, 9:9 + A + 1]                # prev-action one-hot | prev-reward
    h = data[S:S + 1, 0:H]                       # initial hidden state
    c = data[S + 1:S + 2, 0:H]                   # initial cell state

    # ---- encoder: Linear(9,64) -> ReLU -> Linear(64,128) -> ReLU ----
    # bf16 MXU operands (single pass), f32 accumulation; weights loaded lazily.
    f1 = jnp.maximum(
        jnp.dot(obs.astype(bf16), sec("w1").astype(bf16),
                preferred_element_type=jnp.float32) + sec("b1"), 0.0)
    feats = jnp.maximum(
        jnp.dot(f1.astype(bf16), sec("w2").astype(bf16),
                preferred_element_type=jnp.float32) + sec("b2"), 0.0)

    # ---- LSTM input projection for every step at once (cat folded into W_ih) ----
    xproj = (jnp.dot(feats.astype(bf16), sec("wih_f").astype(bf16),
                     preferred_element_type=jnp.float32)
             + jnp.dot(p_in.astype(bf16), sec("wih_ar").astype(bf16),
                       preferred_element_type=jnp.float32)
             + sec("b_g"))                       # (S, 4H) f32

    # W_hh cast once; only value live across the unrolled recurrence.
    whh_bf = sec("whh").astype(bf16)             # (H, 4H) bf16

    # ---- fully-unrolled recurrence (PyTorch gate order: i, f, g, o) ----
    # TODO(synk): holding W_hh resident in the MXU (matmul_push_rhs/acc_lhs/pop)
    # would remove S-1 weight pushes from the serial chain; needs bundle-level
    # validation of FIFO(v5e/v6e) vs MRB(v7x) result semantics before adopting.
    for t in range(S):
        g = xproj[t:t + 1, :] + jnp.dot(h.astype(bf16), whh_bf,
                                        preferred_element_type=jnp.float32)
        sg = jax.nn.sigmoid(g)                   # one EUP pass over all 4H lanes
        tg = jnp.tanh(g)                         # one EUP pass over all 4H lanes
        c = sg[:, H:2 * H] * c + sg[:, 0:H] * tg[:, 2 * H:3 * H]
        h = sg[:, 3 * H:4 * H] * jnp.tanh(c)
        hseq_sc[t:t + 1, :] = h                  # static sublane store, off chain

    # ---- merged actor/critic head: loaded only now (low vreg pressure above) ----
    head = (jnp.dot(hseq_sc[...].astype(bf16), sec("wac").astype(bf16),
                    preferred_element_type=jnp.float32) + sec("bac"))
    out_ref[0:S, :] = head                       # lane-dense unmasked (S, 128) store
    out_ref[S:S + 1, 0:H] = h                    # final h_n
    out_ref[S + 1:S + 2, 0:H] = c                # final c_n


# ----------------------------------------------------------------------------
# Wrapper: pallas_call with cached packed parameters
# ----------------------------------------------------------------------------
def a3c_lstm_forward(obs, p_action, p_reward, packed_params, meta, mem_state=None):
    """obs: (S, 1, 9); p_action: (S, 1, A); p_reward: (S, 1, 1).
    packed_params/meta come from pack_params() and are reused across calls.

    Returns (action_logits (S,1,A), value (S,1,1), (h_n (1,1,H), c_n (1,1,H)))."""
    S = obs.shape[0]
    H, A = meta["H"], meta["A"]
    W_HEAD = meta["W_HEAD"]
    layout = meta["layout"]
    W_in = max(9 + A + 1, H)

    if mem_state is None:
        h0 = jnp.zeros((1, H), jnp.float32)
        c0 = jnp.zeros((1, H), jnp.float32)
    else:
        h0 = mem_state[0].reshape(1, H).astype(jnp.float32)
        c0 = mem_state[1].reshape(1, H).astype(jnp.float32)

    # Per-step rows [obs | prev-action | prev-reward | pad] plus h0/c0 rows ->
    # one small (S+2, W_in) input DMA (state is per-call, so it lives here, not
    # in the cached parameter slab).
    steps = jnp.concatenate(
        [obs.reshape(S, -1), p_action.reshape(S, -1), p_reward.reshape(S, -1)],
        axis=-1).astype(jnp.float32)                              # (S, 9+A+1)
    steps = jnp.pad(steps, ((0, 0), (0, W_in - steps.shape[1])))
    state = jnp.pad(jnp.concatenate([h0, c0], axis=0), ((0, 0), (0, W_in - H)))
    data = jnp.concatenate([steps, state], axis=0)                # (S+2, W_in)

    kernel = functools.partial(a3c_lstm_kernel, S=S, H=H, A=A, layout=layout)
    vmem = pl.BlockSpec(memory_space=pltpu.MemorySpace.VMEM)

    out = pl.pallas_call(
        kernel,
        out_shape=jax.ShapeDtypeStruct((S + 2, W_HEAD), jnp.float32),
        in_specs=[vmem, vmem],
        out_specs=vmem,
        scratch_shapes=[pltpu.VMEM((S, H), jnp.float32)],         # hidden sequence
    )(data, packed_params)

    logits = out[:S, :A].reshape(S, 1, A)
    value = out[:S, A:A + 1].reshape(S, 1, 1)
    h_n = out[S:S + 1, :H].reshape(1, 1, H)
    c_n = out[S + 1:S + 2, :H].reshape(1, 1, H)
    return logits, value, (h_n, c_n)


# ----------------------------------------------------------------------------
# Deterministic parameter construction (mirrors module __init__)
# ----------------------------------------------------------------------------
def init_params(key, hidden_size, num_actions):
    H, A = hidden_size, num_actions
    in_lstm = 128 + A + 1
    ks = jax.random.split(key, 10)
    ortho = jax.nn.initializers.orthogonal

    def unif(k, shape, fan_in):
        bound = 1.0 / jnp.sqrt(fan_in)
        return jax.random.uniform(k, shape, jnp.float32, -bound, bound)

    w_ih = unif(ks[4], (in_lstm, 4 * H), H)          # transposed (in, 4H)
    return {
        # encoder
        "w1": unif(ks[0], (9, 64), 9),
        "b1": unif(ks[1], (1, 64), 9),
        "w2": unif(ks[2], (64, 128), 64),
        "b2": unif(ks[3], (1, 128), 64),
        # LSTM (W_ih split into feats / action / reward row blocks, transposed)
        "wih_f": w_ih[:128, :],
        "wih_a": w_ih[128:128 + A, :],
        "wih_r": w_ih[128 + A:, :],
        "whh": unif(ks[5], (H, 4 * H), H),
        "b_g": unif(ks[6], (1, 4 * H), H) + unif(ks[7], (1, 4 * H), H),  # b_ih+b_hh
        # actor / critic (orthogonal init, zero bias — as in the module)
        "wa": ortho(0.01)(ks[8], (H, A), jnp.float32),
        "ba": jnp.zeros((1, A), jnp.float32),
        "wc": ortho(1.0)(ks[9], (H, 1), jnp.float32),
        "bc": jnp.zeros((1, 1), jnp.float32),
    }


# ----------------------------------------------------------------------------
# Pure-JAX reference (for a correctness check)
# ----------------------------------------------------------------------------
def reference_forward(obs, p_action, p_reward, params):
    S = obs.shape[0]
    H = params["whh"].shape[0]
    x = obs.reshape(S, -1)
    f1 = jnp.maximum(x @ params["w1"] + params["b1"], 0.0)
    feats = jnp.maximum(f1 @ params["w2"] + params["b2"], 0.0)
    mem_in = jnp.concatenate(
        [feats, p_action.reshape(S, -1), p_reward.reshape(S, -1)], axis=-1)
    w_ih = jnp.concatenate(
        [params["wih_f"], params["wih_a"], params["wih_r"]], axis=0)
    xproj = mem_in @ w_ih + params["b_g"]
    h = jnp.zeros((1, H)); c = jnp.zeros((1, H))
    hs = []
    for t in range(S):
        g = xproj[t:t + 1] + h @ params["whh"]
        i = jax.nn.sigmoid(g[:, :H]); f = jax.nn.sigmoid(g[:, H:2 * H])
        gg = jnp.tanh(g[:, 2 * H:3 * H]); o = jax.nn.sigmoid(g[:, 3 * H:])
        c = f * c + i * gg
        h = o * jnp.tanh(c)
        hs.append(h)
    hseq = jnp.concatenate(hs, axis=0)
    logits = hseq @ params["wa"] + params["ba"]
    value = hseq @ params["wc"] + params["bc"]
    return logits, value, h, c


if __name__ == "__main__":
    S, B, A, H = 8, 1, 4, 32   # seq=8, batch=1 (as implied by get_init_states)

    key = jax.random.PRNGKey(0)
    k_obs, k_act, k_rew, k_par = jax.random.split(key, 4)

    obs = jax.random.normal(k_obs, (S, B, 9), jnp.float32)
    p_action = jax.nn.one_hot(
        jax.random.randint(k_act, (S, B), 0, A), A, dtype=jnp.float32)   # (S, B, A)
    p_reward = jax.random.normal(k_rew, (S, B, 1), jnp.float32)

    params = init_params(k_par, H, A)

    # Pack once; reuse the packed slab across all forward calls (actor loop).
    packed, meta = pack_params(params)
    packed = jax.block_until_ready(packed)

    logits, value, (h_n, c_n) = a3c_lstm_forward(obs, p_action, p_reward,
                                                 packed, meta)
    jax.block_until_ready((logits, value, h_n, c_n))

    # Correctness check against a pure-JAX f32 reference.  The kernel uses
    # bf16 MXU operands (single-pass matmuls), so the 8-step LSTM state drifts
    # slightly vs f32 -> loosened tolerance.
    r_logits, r_value, r_h, r_c = reference_forward(obs, p_action, p_reward, params)
    assert jnp.allclose(logits.reshape(S, A), r_logits, atol=5e-2, rtol=5e-2)
    assert jnp.allclose(value.reshape(S, 1), r_value, atol=5e-2, rtol=5e-2)
    assert jnp.allclose(h_n.reshape(1, H), r_h, atol=5e-2, rtol=5e-2)
    assert jnp.allclose(c_n.reshape(1, H), r_c, atol=5e-2, rtol=5e-2)

    print("KERNEL_OK")
</pallas_src>

<mosaic_0001>
module attributes {stable_mosaic.version = 11 : i64} {
  func.func @a3c_lstm_kernel(%arg0: memref<10x32xf32, #tpu.memory_space<vmem>>, %arg1: memref<312x128xf32, #tpu.memory_space<vmem>>, %arg2: memref<10x128xf32, #tpu.memory_space<vmem>>, %arg3: memref<8x32xf32, #tpu.memory_space<vmem>>) attributes {dimension_semantics = [], scalar_prefetch = 0 : i64, scratch_operands = 1 : i64, tpu.core_type = #tpu.core_type<tc>} {
    %c0 = arith.constant 0 : index
    %c0_0 = arith.constant 0 : index
    %0 = vector.load %arg0[%c0, %c0_0] : memref<10x32xf32, #tpu.memory_space<vmem>>, vector<10x32xf32>
    %1 = vector.extract_strided_slice %0 {offsets = [0, 0], sizes = [8, 9], strides = [1, 1]} : vector<10x32xf32> to vector<8x9xf32>
    %2 = vector.extract_strided_slice %0 {offsets = [0, 9], sizes = [8, 5], strides = [1, 1]} : vector<10x32xf32> to vector<8x5xf32>
    %3 = vector.extract_strided_slice %0 {offsets = [8, 0], sizes = [1, 32], strides = [1, 1]} : vector<10x32xf32> to vector<1x32xf32>
    %4 = vector.extract_strided_slice %0 {offsets = [9, 0], sizes = [1, 32], strides = [1, 1]} : vector<10x32xf32> to vector<1x32xf32>
    %5 = arith.truncf %1 : vector<8x9xf32> to vector<8x9xbf16>
    %c0_1 = arith.constant 0 : index
    %c0_2 = arith.constant 0 : index
    %6 = vector.load %arg1[%c0_1, %c0_2] : memref<312x128xf32, #tpu.memory_space<vmem>>, vector<9x64xf32>
    %7 = arith.truncf %6 : vector<9x64xf32> to vector<9x64xbf16>
    %cst = arith.constant dense<0.000000e+00> : vector<8x64xf32>
    %8 = tpu.matmul %5, %7, %cst {dimension_numbers = #tpu.dot_dimension_numbers<[1], [0], [0], [1], [0, 0, 1, 1], [], []>} : vector<8x9xbf16>, vector<9x64xbf16>, vector<8x64xf32> -> vector<8x64xf32>
    %c16 = arith.constant 16 : index
    %c0_3 = arith.constant 0 : index
    %9 = vector.load %arg1[%c16, %c0_3] : memref<312x128xf32, #tpu.memory_space<vmem>>, vector<1x64xf32>
    %10 = vector.broadcast %9 : vector<1x64xf32> to vector<8x64xf32>
    %11 = arith.addf %8, %10 : vector<8x64xf32>
    %cst_4 = arith.constant 0.000000e+00 : f32
    %12 = vector.broadcast %cst_4 : f32 to vector<8x64xf32>
    %13 = arith.maximumf %11, %12 : vector<8x64xf32>
    %14 = arith.truncf %13 : vector<8x64xf32> to vector<8x64xbf16>
    %c24 = arith.constant 24 : index
    %c0_5 = arith.constant 0 : index
    %15 = vector.load %arg1[%c24, %c0_5] : memref<312x128xf32, #tpu.memory_space<vmem>>, vector<64x128xf32>
    %16 = arith.truncf %15 : vector<64x128xf32> to vector<64x128xbf16>
    %cst_6 = arith.constant dense<0.000000e+00> : vector<8x128xf32>
    %17 = tpu.matmul %14, %16, %cst_6 {dimension_numbers = #tpu.dot_dimension_numbers<[1], [0], [0], [1], [0, 0, 1, 1], [], []>} : vector<8x64xbf16>, vector<64x128xbf16>, vector<8x128xf32> -> vector<8x128xf32>
    %c88 = arith.constant 88 : index
    %c0_7 = arith.constant 0 : index
    %18 = vector.load %arg1[%c88, %c0_7] : memref<312x128xf32, #tpu.memory_space<vmem>>, vector<1x128xf32>
    %19 = vector.broadcast %18 : vector<1x128xf32> to vector<8x128xf32>
    %20 = arith.addf %17, %19 : vector<8x128xf32>
    %cst_8 = arith.constant 0.000000e+00 : f32
    %21 = vector.broadcast %cst_8 : f32 to vector<8x128xf32>
    %22 = arith.maximumf %20, %21 : vector<8x128xf32>
    %23 = arith.truncf %22 : vector<8x128xf32> to vector<8x128xbf16>
    %c96 = arith.constant 96 : index
    %c0_9 = arith.constant 0 : index
    %24 = vector.load %arg1[%c96, %c0_9] : memref<312x128xf32, #tpu.memory_space<vmem>>, vector<128x128xf32>
    %25 = arith.truncf %24 : vector<128x128xf32> to vector<128x128xbf16>
    %cst_10 = arith.constant dense<0.000000e+00> : vector<8x128xf32>
    %26 = tpu.matmul %23, %25, %cst_10 {dimension_numbers = #tpu.dot_dimension_numbers<[1], [0], [0], [1], [0, 0, 1, 1], [], []>} : vector<8x128xbf16>, vector<128x128xbf16>, vector<8x128xf32> -> vector<8x128xf32>
    %27 = arith.truncf %2 : vector<8x5xf32> to vector<8x5xbf16>
    %c224 = arith.constant 224 : index
    %c0_11 = arith.constant 0 : index
    %28 = vector.load %arg1[%c224, %c0_11] : memref<312x128xf32, #tpu.memory_space<vmem>>, vector<5x128xf32>
    %29 = arith.truncf %28 : vector<5x128xf32> to vector<5x128xbf16>
    %cst_12 = arith.constant dense<0.000000e+00> : vector<8x128xf32>
    %30 = tpu.matmul %27, %29, %cst_12 {dimension_numbers = #tpu.dot_dimension_numbers<[1], [0], [0], [1], [0, 0, 1, 1], [], []>} : vector<8x5xbf16>, vector<5x128xbf16>, vector<8x128xf32> -> vector<8x128xf32>
    %31 = arith.addf %26, %30 : vector<8x128xf32>
    %c264 = arith.constant 264 : index
    %c0_13 = arith.constant 0 : index
    %32 = vector.load %arg1[%c264, %c0_13] : memref<312x128xf32, #tpu.memory_space<vmem>>, vector<1x128xf32>
    %33 = vector.broadcast %32 : vector<1x128xf32> to vector<8x128xf32>
    %34 = arith.addf %31, %33 : vector<8x128xf32>
    %c232 = arith.constant 232 : index
    %c0_14 = arith.constant 0 : index
    %35 = vector.load %arg1[%c232, %c0_14] : memref<312x128xf32, #tpu.memory_space<vmem>>, vector<32x128xf32>
    %36 = arith.truncf %35 : vector<32x128xf32> to vector<32x128xbf16>
    %37 = vector.extract_strided_slice %34 {offsets = [0, 0], sizes = [1, 128], strides = [1, 1]} : vector<8x128xf32> to vector<1x128xf32>
    %38 = arith.truncf %3 : vector<1x32xf32> to vector<1x32xbf16>
    %cst_15 = arith.constant dense<0.000000e+00> : vector<1x128xf32>
    %39 = tpu.matmul %38, %36, %cst_15 {dimension_numbers = #tpu.dot_dimension_numbers<[1], [0], [0], [1], [0, 0, 1, 1], [], []>} : vector<1x32xbf16>, vector<32x128xbf16>, vector<1x128xf32> -> vector<1x128xf32>
    %40 = arith.addf %37, %39 : vector<1x128xf32>
    %41 = arith.negf %40 : vector<1x128xf32>
    %42 = math.exp %41 : vector<1x128xf32>
    %cst_16 = arith.constant 1.000000e+00 : f32
    %43 = vector.broadcast %cst_16 : f32 to vector<1x128xf32>
    %44 = arith.addf %43, %42 : vector<1x128xf32>
    %45 = arith.divf %43, %44 : vector<1x128xf32>
    %46 = math.tanh %40 : vector<1x128xf32>
    %47 = vector.extract_strided_slice %45 {offsets = [0, 32], sizes = [1, 32], strides = [1, 1]} : vector<1x128xf32> to vector<1x32xf32>
    %48 = arith.mulf %47, %4 : vector<1x32xf32>
    %49 = vector.extract_strided_slice %45 {offsets = [0, 0], sizes = [1, 32], strides = [1, 1]} : vector<1x128xf32> to vector<1x32xf32>
    %50 = vector.extract_strided_slice %46 {offsets = [0, 64], sizes = [1, 32], strides = [1, 1]} : vector<1x128xf32> to vector<1x32xf32>
    %51 = arith.mulf %49, %50 : vector<1x32xf32>
    %52 = arith.addf %48, %51 : vector<1x32xf32>
    %53 = vector.extract_strided_slice %45 {offsets = [0, 96], sizes = [1, 32], strides = [1, 1]} : vector<1x128xf32> to vector<1x32xf32>
    %54 = math.tanh %52 : vector<1x32xf32>
    %55 = arith.mulf %53, %54 : vector<1x32xf32>
    %c0_17 = arith.constant 0 : index
    %c0_18 = arith.constant 0 : index
    %56 = vector.load %arg3[%c0_17, %c0_18] : memref<8x32xf32, #tpu.memory_space<vmem>>, vector<1x32xf32>
    tpu.vector_store %arg3[%c0_17, %c0_18], %55 {strides = array<i32>} : memref<8x32xf32, #tpu.memory_space<vmem>>, vector<1x32xf32>,
    %57 = vector.extract_strided_slice %34 {offsets = [1, 0], sizes = [1, 128], strides = [1, 1]} : vector<8x128xf32> to vector<1x128xf32>
    %58 = arith.truncf %55 : vector<1x32xf32> to vector<1x32xbf16>
    %cst_19 = arith.constant dense<0.000000e+00> : vector<1x128xf32>
    %59 = tpu.matmul %58, %36, %cst_19 {dimension_numbers = #tpu.dot_dimension_numbers<[1], [0], [0], [1], [0, 0, 1, 1], [], []>} : vector<1x32xbf16>, vector<32x128xbf16>, vector<1x128xf32> -> vector<1x128xf32>
    %60 = arith.addf %57, %59 : vector<1x128xf32>
    %61 = arith.negf %60 : vector<1x128xf32>
    %62 = math.exp %61 : vector<1x128xf32>
    %cst_20 = arith.constant 1.000000e+00 : f32
    %63 = vector.broadcast %cst_20 : f32 to vector<1x128xf32>
    %64 = arith.addf %63, %62 : vector<1x128xf32>
    %65 = arith.divf %63, %64 : vector<1x128xf32>
    %66 = math.tanh %60 : vector<1x128xf32>
    %67 = vector.extract_strided_slice %65 {offsets = [0, 32], sizes = [1, 32], strides = [1, 1]} : vector<1x128xf32> to vector<1x32xf32>
    %68 = arith.mulf %67, %52 : vector<1x32xf32>
    %69 = vector.extract_strided_slice %65 {offsets = [0, 0], sizes = [1, 32], strides = [1, 1]} : vector<1x128xf32> to vector<1x32xf32>
    %70 = vector.extract_strided_slice %66 {offsets = [0, 64], sizes = [1, 32], strides = [1, 1]} : vector<1x128xf32> to vector<1x32xf32>
    %71 = arith.mulf %69, %70 : vector<1x32xf32>
    %72 = arith.addf %68, %71 : vector<1x32xf32>
    %73 = vector.extract_strided_slice %65 {offsets = [0, 96], sizes = [1, 32], strides = [1, 1]} : vector<1x128xf32> to vector<1x32xf32>
    %74 = math.tanh %72 : vector<1x32xf32>
    %75 = arith.mulf %73, %74 : vector<1x32xf32>
    %c1 = arith.constant 1 : index
    %c0_21 = arith.constant 0 : index
    %76 = vector.load %arg3[%c1, %c0_21] : memref<8x32xf32, #tpu.memory_space<vmem>>, vector<1x32xf32>
    tpu.vector_store %arg3[%c1, %c0_21], %75 {strides = array<i32>} : memref<8x32xf32, #tpu.memory_space<vmem>>, vector<1x32xf32>,
    %77 = vector.extract_strided_slice %34 {offsets = [2, 0], sizes = [1, 128], strides = [1, 1]} : vector<8x128xf32> to vector<1x128xf32>
    %78 = arith.truncf %75 : vector<1x32xf32> to vector<1x32xbf16>
    %cst_22 = arith.constant dense<0.000000e+00> : vector<1x128xf32>
    %79 = tpu.matmul %78, %36, %cst_22 {dimension_numbers = #tpu.dot_dimension_numbers<[1], [0], [0], [1], [0, 0, 1, 1], [], []>} : vector<1x32xbf16>, vector<32x128xbf16>, vector<1x128xf32> -> vector<1x128xf32>
    %80 = arith.addf %77, %79 : vector<1x128xf32>
    %81 = arith.negf %80 : vector<1x128xf32>
    %82 = math.exp %81 : vector<1x128xf32>
    %cst_23 = arith.constant 1.000000e+00 : f32
    %83 = vector.broadcast %cst_23 : f32 to vector<1x128xf32>
    %84 = arith.addf %83, %82 : vector<1x128xf32>
    %85 = arith.divf %83, %84 : vector<1x128xf32>
    %86 = math.tanh %80 : vector<1x128xf32>
    %87 = vector.extract_strided_slice %85 {offsets = [0, 32], sizes = [1, 32], strides = [1, 1]} : vector<1x128xf32> to vector<1x32xf32>
    %88 = arith.mulf %87, %72 : vector<1x32xf32>
    %89 = vector.extract_strided_slice %85 {offsets = [0, 0], sizes = [1, 32], strides = [1, 1]} : vector<1x128xf32> to vector<1x32xf32>
    %90 = vector.extract_strided_slice %86 {offsets = [0, 64], sizes = [1, 32], strides = [1, 1]} : vector<1x128xf32> to vector<1x32xf32>
    %91 = arith.mulf %89, %90 : vector<1x32xf32>
    %92 = arith.addf %88, %91 : vector<1x32xf32>
    %93 = vector.extract_strided_slice %85 {offsets = [0, 96], sizes = [1, 32], strides = [1, 1]} : vector<1x128xf32> to vector<1x32xf32>
    %94 = math.tanh %92 : vector<1x32xf32>
    %95 = arith.mulf %93, %94 : vector<1x32xf32>
    %c2 = arith.constant 2 : index
    %c0_24 = arith.constant 0 : index
    %96 = vector.load %arg3[%c2, %c0_24] : memref<8x32xf32, #tpu.memory_space<vmem>>, vector<1x32xf32>
    tpu.vector_store %arg3[%c2, %c0_24], %95 {strides = array<i32>} : memref<8x32xf32, #tpu.memory_space<vmem>>, vector<1x32xf32>,
    %97 = vector.extract_strided_slice %34 {offsets = [3, 0], sizes = [1, 128], strides = [1, 1]} : vector<8x128xf32> to vector<1x128xf32>
    %98 = arith.truncf %95 : vector<1x32xf32> to vector<1x32xbf16>
    %cst_25 = arith.constant dense<0.000000e+00> : vector<1x128xf32>
    %99 = tpu.matmul %98, %36, %cst_25 {dimension_numbers = #tpu.dot_dimension_numbers<[1], [0], [0], [1], [0, 0, 1, 1], [], []>} : vector<1x32xbf16>, vector<32x128xbf16>, vector<1x128xf32> -> vector<1x128xf32>
    %100 = arith.addf %97, %99 : vector<1x128xf32>
    %101 = arith.negf %100 : vector<1x128xf32>
    %102 = math.exp %101 : vector<1x128xf32>
    %cst_26 = arith.constant 1.000000e+00 : f32
    %103 = vector.broadcast %cst_26 : f32 to vector<1x128xf32>
    %104 = arith.addf %103, %102 : vector<1x128xf32>
    %105 = arith.divf %103, %104 : vector<1x128xf32>
    %106 = math.tanh %100 : vector<1x128xf32>
    %107 = vector.extract_strided_slice %105 {offsets = [0, 32], sizes = [1, 32], strides = [1, 1]} : vector<1x128xf32> to vector<1x32xf32>
    %108 = arith.mulf %107, %92 : vector<1x32xf32>
    %109 = vector.extract_strided_slice %105 {offsets = [0, 0], sizes = [1, 32], strides = [1, 1]} : vector<1x128xf32> to vector<1x32xf32>
    %110 = vector.extract_strided_slice %106 {offsets = [0, 64], sizes = [1, 32], strides = [1, 1]} : vector<1x128xf32> to vector<1x32xf32>
    %111 = arith.mulf %109, %110 : vector<1x32xf32>
    %112 = arith.addf %108, %111 : vector<1x32xf32>
    %113 = vector.extract_strided_slice %105 {offsets = [0, 96], sizes = [1, 32], strides = [1, 1]} : vector<1x128xf32> to vector<1x32xf32>
    %114 = math.tanh %112 : vector<1x32xf32>
    %115 = arith.mulf %113, %114 : vector<1x32xf32>
    %c3 = arith.constant 3 : index
    %c0_27 = arith.constant 0 : index
    %116 = vector.load %arg3[%c3, %c0_27] : memref<8x32xf32, #tpu.memory_space<vmem>>, vector<1x32xf32>
    tpu.vector_store %arg3[%c3, %c0_27], %115 {strides = array<i32>} : memref<8x32xf32, #tpu.memory_space<vmem>>, vector<1x32xf32>,
    %117 = vector.extract_strided_slice %34 {offsets = [4, 0], sizes = [1, 128], strides = [1, 1]} : vector<8x128xf32> to vector<1x128xf32>
    %118 = arith.truncf %115 : vector<1x32xf32> to vector<1x32xbf16>
    %cst_28 = arith.constant dense<0.000000e+00> : vector<1x128xf32>
    %119 = tpu.matmul %118, %36, %cst_28 {dimension_numbers = #tpu.dot_dimension_numbers<[1], [0], [0], [1], [0, 0, 1, 1], [], []>} : vector<1x32xbf16>, vector<32x128xbf16>, vector<1x128xf32> -> vector<1x128xf32>
    %120 = arith.addf %117, %119 : vector<1x128xf32>
    %121 = arith.negf %120 : vector<1x128xf32>
    %122 = math.exp %121 : vector<1x128xf32>
    %cst_29 = arith.constant 1.000000e+00 : f32
    %123 = vector.broadcast %cst_29 : f32 to vector<1x128xf32>
    %124 = arith.addf %123, %122 : vector<1x128xf32>
    %125 = arith.divf %123, %124 : vector<1x128xf32>
    %126 = math.tanh %120 : vector<1x128xf32>
    %127 = vector.extract_strided_slice %125 {offsets = [0, 32], sizes = [1, 32], strides = [1, 1]} : vector<1x128xf32> to vector<1x32xf32>
    %128 = arith.mulf %127, %112 : vector<1x32xf32>
    %129 = vector.extract_strided_slice %125 {offsets = [0, 0], sizes = [1, 32], strides = [1, 1]} : vector<1x128xf32> to vector<1x32xf32>
    %130 = vector.extract_strided_slice %126 {offsets = [0, 64], sizes = [1, 32], strides = [1, 1]} : vector<1x128xf32> to vector<1x32xf32>
    %131 = arith.mulf %129, %130 : vector<1x32xf32>
    %132 = arith.addf %128, %131 : vector<1x32xf32>
    %133 = vector.extract_strided_slice %125 {offsets = [0, 96], sizes = [1, 32], strides = [1, 1]} : vector<1x128xf32> to vector<1x32xf32>
    %134 = math.tanh %132 : vector<1x32xf32>
    %135 = arith.mulf %133, %134 : vector<1x32xf32>
    %c4 = arith.constant 4 : index
    %c0_30 = arith.constant 0 : index
    %136 = vector.load %arg3[%c4, %c0_30] : memref<8x32xf32, #tpu.memory_space<vmem>>, vector<1x32xf32>
    tpu.vector_store %arg3[%c4, %c0_30], %135 {strides = array<i32>} : memref<8x32xf32, #tpu.memory_space<vmem>>, vector<1x32xf32>,
    %137 = vector.extract_strided_slice %34 {offsets = [5, 0], sizes = [1, 128], strides = [1, 1]} : vector<8x128xf32> to vector<1x128xf32>
    %138 = arith.truncf %135 : vector<1x32xf32> to vector<1x32xbf16>
    %cst_31 = arith.constant dense<0.000000e+00> : vector<1x128xf32>
    %139 = tpu.matmul %138, %36, %cst_31 {dimension_numbers = #tpu.dot_dimension_numbers<[1], [0], [0], [1], [0, 0, 1, 1], [], []>} : vector<1x32xbf16>, vector<32x128xbf16>, vector<1x128xf32> -> vector<1x128xf32>
    %140 = arith.addf %137, %139 : vector<1x128xf32>
    %141 = arith.negf %140 : vector<1x128xf32>
    %142 = math.exp %141 : vector<1x128xf32>
    %cst_32 = arith.constant 1.000000e+00 : f32
    %143 = vector.broadcast %cst_32 : f32 to vector<1x128xf32>
    %144 = arith.addf %143, %142 : vector<1x128xf32>
    %145 = arith.divf %143, %144 : vector<1x128xf32>
    %146 = math.tanh %140 : vector<1x128xf32>
    %147 = vector.extract_strided_slice %145 {offsets = [0, 32], sizes = [1, 32], strides = [1, 1]} : vector<1x128xf32> to vector<1x32xf32>
    %148 = arith.mulf %147, %132 : vector<1x32xf32>
    %149 = vector.extract_strided_slice %145 {offsets = [0, 0], sizes = [1, 32], strides = [1, 1]} : vector<1x128xf32> to vector<1x32xf32>
    %150 = vector.extract_strided_slice %146 {offsets = [0, 64], sizes = [1, 32], strides = [1, 1]} : vector<1x128xf32> to vector<1x32xf32>
    %151 = arith.mulf %149, %150 : vector<1x32xf32>
    %152 = arith.addf %148, %151 : vector<1x32xf32>
    %153 = vector.extract_strided_slice %145 {offsets = [0, 96], sizes = [1, 32], strides = [1, 1]} : vector<1x128xf32> to vector<1x32xf32>
    %154 = math.tanh %152 : vector<1x32xf32>
    %155 = arith.mulf %153, %154 : vector<1x32xf32>
    %c5 = arith.constant 5 : index
    %c0_33 = arith.constant 0 : index
    %156 = vector.load %arg3[%c5, %c0_33] : memref<8x32xf32, #tpu.memory_space<vmem>>, vector<1x32xf32>
    tpu.vector_store %arg3[%c5, %c0_33], %155 {strides = array<i32>} : memref<8x32xf32, #tpu.memory_space<vmem>>, vector<1x32xf32>,
    %157 = vector.extract_strided_slice %34 {offsets = [6, 0], sizes = [1, 128], strides = [1, 1]} : vector<8x128xf32> to vector<1x128xf32>
    %158 = arith.truncf %155 : vector<1x32xf32> to vector<1x32xbf16>
    %cst_34 = arith.constant dense<0.000000e+00> : vector<1x128xf32>
    %159 = tpu.matmul %158, %36, %cst_34 {dimension_numbers = #tpu.dot_dimension_numbers<[1], [0], [0], [1], [0, 0, 1, 1], [], []>} : vector<1x32xbf16>, vector<32x128xbf16>, vector<1x128xf32> -> vector<1x128xf32>
    %160 = arith.addf %157, %159 : vector<1x128xf32>
    %161 = arith.negf %160 : vector<1x128xf32>
    %162 = math.exp %161 : vector<1x128xf32>
    %cst_35 = arith.constant 1.000000e+00 : f32
    %163 = vector.broadcast %cst_35 : f32 to vector<1x128xf32>
    %164 = arith.addf %163, %162 : vector<1x128xf32>
    %165 = arith.divf %163, %164 : vector<1x128xf32>
    %166 = math.tanh %160 : vector<1x128xf32>
    %167 = vector.extract_strided_slice %165 {offsets = [0, 32], sizes = [1, 32], strides = [1, 1]} : vector<1x128xf32> to vector<1x32xf32>
    %168 = arith.mulf %167, %152 : vector<1x32xf32>
    %169 = vector.extract_strided_slice %165 {offsets = [0, 0], sizes = [1, 32], strides = [1, 1]} : vector<1x128xf32> to vector<1x32xf32>
    %170 = vector.extract_strided_slice %166 {offsets = [0, 64], sizes = [1, 32], strides = [1, 1]} : vector<1x128xf32> to vector<1x32xf32>
    %171 = arith.mulf %169, %170 : vector<1x32xf32>
    %172 = arith.addf %168, %171 : vector<1x32xf32>
    %173 = vector.extract_strided_slice %165 {offsets = [0, 96], sizes = [1, 32], strides = [1, 1]} : vector<1x128xf32> to vector<1x32xf32>
    %174 = math.tanh %172 : vector<1x32xf32>
    %175 = arith.mulf %173, %174 : vector<1x32xf32>
    %c6 = arith.constant 6 : index
    %c0_36 = arith.constant 0 : index
    %176 = vector.load %arg3[%c6, %c0_36] : memref<8x32xf32, #tpu.memory_space<vmem>>, vector<1x32xf32>
    tpu.vector_store %arg3[%c6, %c0_36], %175 {strides = array<i32>} : memref<8x32xf32, #tpu.memory_space<vmem>>, vector<1x32xf32>,
    %177 = vector.extract_strided_slice %34 {offsets = [7, 0], sizes = [1, 128], strides = [1, 1]} : vector<8x128xf32> to vector<1x128xf32>
    %178 = arith.truncf %175 : vector<1x32xf32> to vector<1x32xbf16>
    %cst_37 = arith.constant dense<0.000000e+00> : vector<1x128xf32>
    %179 = tpu.matmul %178, %36, %cst_37 {dimension_numbers = #tpu.dot_dimension_numbers<[1], [0], [0], [1], [0, 0, 1, 1], [], []>} : vector<1x32xbf16>, vector<32x128xbf16>, vector<1x128xf32> -> vector<1x128xf32>
    %180 = arith.addf %177, %179 : vector<1x128xf32>
    %181 = arith.negf %180 : vector<1x128xf32>
    %182 = math.exp %181 : vector<1x128xf32>
    %cst_38 = arith.constant 1.000000e+00 : f32
    %183 = vector.broadcast %cst_38 : f32 to vector<1x128xf32>
    %184 = arith.addf %183, %182 : vector<1x128xf32>
    %185 = arith.divf %183, %184 : vector<1x128xf32>
    %186 = math.tanh %180 : vector<1x128xf32>
    %187 = vector.extract_strided_slice %185 {offsets = [0, 32], sizes = [1, 32], strides = [1, 1]} : vector<1x128xf32> to vector<1x32xf32>
    %188 = arith.mulf %187, %172 : vector<1x32xf32>
    %189 = vector.extract_strided_slice %185 {offsets = [0, 0], sizes = [1, 32], strides = [1, 1]} : vector<1x128xf32> to vector<1x32xf32>
    %190 = vector.extract_strided_slice %186 {offsets = [0, 64], sizes = [1, 32], strides = [1, 1]} : vector<1x128xf32> to vector<1x32xf32>
    %191 = arith.mulf %189, %190 : vector<1x32xf32>
    %192 = arith.addf %188, %191 : vector<1x32xf32>
    %193 = vector.extract_strided_slice %185 {offsets = [0, 96], sizes = [1, 32], strides = [1, 1]} : vector<1x128xf32> to vector<1x32xf32>
    %194 = math.tanh %192 : vector<1x32xf32>
    %195 = arith.mulf %193, %194 : vector<1x32xf32>
    %c7 = arith.constant 7 : index
    %c0_39 = arith.constant 0 : index
    %196 = vector.load %arg3[%c7, %c0_39] : memref<8x32xf32, #tpu.memory_space<vmem>>, vector<1x32xf32>
    tpu.vector_store %arg3[%c7, %c0_39], %195 {strides = array<i32>} : memref<8x32xf32, #tpu.memory_space<vmem>>, vector<1x32xf32>,
    %c0_40 = arith.constant 0 : index
    %c0_41 = arith.constant 0 : index
    %197 = vector.load %arg3[%c0_40, %c0_41] : memref<8x32xf32, #tpu.memory_space<vmem>>, vector<8x32xf32>
    %198 = arith.truncf %197 : vector<8x32xf32> to vector<8x32xbf16>
    %c272 = arith.constant 272 : index
    %c0_42 = arith.constant 0 : index
    %199 = vector.load %arg1[%c272, %c0_42] : memref<312x128xf32, #tpu.memory_space<vmem>>, vector<32x128xf32>
    %200 = arith.truncf %199 : vector<32x128xf32> to vector<32x128xbf16>
    %cst_43 = arith.constant dense<0.000000e+00> : vector<8x128xf32>
    %201 = tpu.matmul %198, %200, %cst_43 {dimension_numbers = #tpu.dot_dimension_numbers<[1], [0], [0], [1], [0, 0, 1, 1], [], []>} : vector<8x32xbf16>, vector<32x128xbf16>, vector<8x128xf32> -> vector<8x128xf32>
    %c304 = arith.constant 304 : index
    %c0_44 = arith.constant 0 : index
    %202 = vector.load %arg1[%c304, %c0_44] : memref<312x128xf32, #tpu.memory_space<vmem>>, vector<1x128xf32>
    %203 = vector.broadcast %202 : vector<1x128xf32> to vector<8x128xf32>
    %204 = arith.addf %201, %203 : vector<8x128xf32>
    %c0_45 = arith.constant 0 : index
    %c0_46 = arith.constant 0 : index
    %205 = vector.load %arg2[%c0_45, %c0_46] : memref<10x128xf32, #tpu.memory_space<vmem>>, vector<8x128xf32>
    tpu.vector_store %arg2[%c0_45, %c0_46], %204 {strides = array<i32>} : memref<10x128xf32, #tpu.memory_space<vmem>>, vector<8x128xf32>,
    %c8 = arith.constant 8 : index
    %c0_47 = arith.constant 0 : index
    %206 = vector.load %arg2[%c8, %c0_47] : memref<10x128xf32, #tpu.memory_space<vmem>>, vector<1x32xf32>
    tpu.vector_store %arg2[%c8, %c0_47], %195 {strides = array<i32>} : memref<10x128xf32, #tpu.memory_space<vmem>>, vector<1x32xf32>,
    %c9 = arith.constant 9 : index
    %c0_48 = arith.constant 0 : index
    %207 = vector.load %arg2[%c9, %c0_48] : memref<10x128xf32, #tpu.memory_space<vmem>>, vector<1x32xf32>
    tpu.vector_store %arg2[%c9, %c0_48], %192 {strides = array<i32>} : memref<10x128xf32, #tpu.memory_space<vmem>>, vector<1x32xf32>,
    return
  }
}

</mosaic_0001>

<llo_original>
// kernel: tpu_custom_call.1
$region0: #{tpu_custom_call.1}
  #allocation0 [shape = 'u32[]', space=smem, size = 0x4, offset = 0x4, fixed_abs, tag = 'smem constant byte address 0x4 - core index']
  #allocation1 [shape = 'u32[144,128]{1,0:T(1,128)}', space=vmem, size = 0x12000, scoped, tag = 'internal scratch']
  #allocation2 [shape = 'f32[8,32]{1,0:T(8,128)}', space=vmem, size = 0x1000, scoped, tag = 'scratch operand']
  %s0 = inlined_call_operand.hbm [shape: f32[10,32], index: 0, kind: input, shape index: {}]
  %s1 = inlined_call_operand.hbm [shape: f32[312,128], index: 1, kind: input, shape index: {}]
  %s2 = inlined_call_operand.hbm [shape: f32[10,128], index: 2, kind: output, shape index: {}]
  %s3 = sld [smem:[#allocation0]]
  $region26: #{tpu_custom_call.1} parent=0
    _
  %s5 = ssub.s32 1, %s3
  %s6 = scalar_select 0, %s5, %s3
  $region1: #{tpu_custom_call.1} parent=0
    #allocation3 [shape = 'u8[8192]{0}', space=vmem, size = 0x2000, scoped, tag = 'input window, operand 0, single buffered']
    #allocation4 [shape = 's32[1]{0}', space=sflag, size = 0x4, scoped, tag = 'scoped memory for tpu_custom_call.1']
    #allocation5 [shape = 's32[1]{0}', space=sflag, size = 0x4, scoped, tag = 'scoped memory for tpu_custom_call.1']
    #allocation6 [shape = 'u8[159744]{0}', space=vmem, size = 0x27000, scoped, tag = 'input window, operand 1, single buffered']
    #allocation7 [shape = 's32[1]{0}', space=sflag, size = 0x4, scoped, tag = 'scoped memory for tpu_custom_call.1']
    #allocation8 [shape = 'u8[8192]{0}', space=vmem, size = 0x2000, scoped, tag = 'output window, operand 0, single buffered']
    %7 = vsyncpa [#allocation4], 0
    %8 = vsyncpa [#allocation7], 0
    %9 = vsyncpa [#allocation5], 0
    // Predicated region
    $region2: #{tpu_custom_call.1} parent=1 // pred_check
      _
    $region3: #{tpu_custom_call.1} parent=1 // pred_check_branch
      %11 = sbr.rel (0) target = $region5
    $region4: #{tpu_custom_call.1} parent=1 // pred_region
      %s13 = ssub.s32 256, 256
      %14 = vsyncadd [#allocation4], %s13
      %s15 = sshll.u32 [#allocation3], 4
      %s16 = int_to_ptr.vmem [resolvable:$true] %s15
      %21 = dma.hbm_to_vmem [thread:$0]  %s0, 256, %s16, [#allocation4], 128, 128, 8
    $region5: #{tpu_custom_call.1} parent=1 // pred_fallthru
      _
    // Predicated region
    $region6: #{tpu_custom_call.1} parent=1 // pred_check
      _
    $region7: #{tpu_custom_call.1} parent=1 // pred_check_branch
      %23 = sbr.rel (0) target = $region9
    $region8: #{tpu_custom_call.1} parent=1 // pred_region
      %s25 = ssub.s32 4992, 4992
      %26 = vsyncadd [#allocation7], %s25
      %s27 = sshll.u32 [#allocation6], 4
      %s28 = int_to_ptr.vmem [resolvable:$true] %s27
      %33 = dma.hbm_to_vmem [thread:$0]  %s1, 4992, %s28, [#allocation7], 128, 128, 8
    $region9: #{tpu_custom_call.1} parent=1 // pred_fallthru
      _
    // Predicated region
    $region10: #{tpu_custom_call.1} parent=1 // pred_check
      _
    $region11: #{tpu_custom_call.1} parent=1 // pred_check_branch
      %35 = sbr.rel (0) target = $region13
    $region12: #{tpu_custom_call.1} parent=1 // pred_region
      %36 = dma.done [#allocation4], 256
    $region13: #{tpu_custom_call.1} parent=1 // pred_fallthru
      _
    // Predicated region
    $region14: #{tpu_custom_call.1} parent=1 // pred_check
      _
    $region15: #{tpu_custom_call.1} parent=1 // pred_check_branch
      %38 = sbr.rel (0) target = $region17
    $region16: #{tpu_custom_call.1} parent=1 // pred_region
      %39 = dma.done [#allocation7], 4992
    $region17: #{tpu_custom_call.1} parent=1 // pred_fallthru
      _
    %v41 = vld [vmem:[#allocation3] sm:$0xff]
    %v42 = vld [vmem:[#allocation3 + $0x8] sm:$0x3]
    %v43 = vpack.c.bf16 %v41, %v41
    %v44 = vld [vmem:[#allocation6] sm:$0xff]
    %v45 = vld [vmem:[#allocation6 + $0x8] sm:$0x1]
    %v46 = vpack.c.bf16 %v45, %v44
    %v47 = vld [vmem:[#allocation6 + $0x10] sm:$0x1]
    %v48 = vlaneseq
    %v49 = vshrl.u32 %v48, 7
    %v50 = vsub.s32 0, %v49
    %v51 = vrot.slane %v47, %v50
    %vm52 = vcmask 72704
    %v54 = vsel %vm52, %v43, 0
    %vm56 = vcmask 1043456
    %vm57 = vcmask 1044480
    %v58 = vsel %vm56, 4294967295, 65535
    %v59 = vsel %vm57, %v58, 0
    %v61 = vand.u32 %v46, %v59
    %63 = vmatprep.subr.bf16.mxu0 0
    %64 = vmatpush1.bf16.msra.mxu0 %v61
    %65 = vmatprep.subr.bf16.mxu0 0
    %66 = vmatpush1.bf16.msra.mxu0 0
    %67 = vmatprep.subr.bf16.mxu0 0
    %68 = vmatpush1.bf16.msra.mxu0 0
    %69 = vmatprep.subr.bf16.mxu0 0
    %70 = vmatpush1.bf16.msra.mxu0 0
    %71 = vmatprep.subr.bf16.mxu0 0
    %72 = vmatpush1.bf16.msra.mxu0 0
    %73 = vmatprep.subr.bf16.mxu0 0
    %74 = vmatpush1.bf16.msra.mxu0 0
    %75 = vmatprep.subr.bf16.mxu0 0
    %76 = vmatpush1.bf16.msra.mxu0 0
    %77 = vmatprep.subr.bf16.mxu0 0
    %78 = vmatpush1.bf16.msra.mxu0 0
    %79 = vmatprep.subr.bf16.mxu0 0
    %80 = vmatpush1.bf16.msra.mxu0 0
    %81 = vmatprep.subr.bf16.mxu0 0
    %82 = vmatpush1.bf16.msra.mxu0 0
    %83 = vmatprep.subr.bf16.mxu0 0
    %84 = vmatpush1.bf16.msra.mxu0 0
    %85 = vmatprep.subr.bf16.mxu0 0
    %86 = vmatpush1.bf16.msra.mxu0 0
    %87 = vmatprep.subr.bf16.mxu0 0
    %88 = vmatpush1.bf16.msra.mxu0 0
    %89 = vmatprep.subr.bf16.mxu0 0
    %90 = vmatpush1.bf16.msra.mxu0 0
    %91 = vmatprep.subr.bf16.mxu0 0
    %92 = vmatpush1.bf16.msra.mxu0 0
    %93 = vmatprep.subr.bf16.mxu0 0
    %94 = vmatpush1.bf16.msra.mxu0 0
    %95 = vmatprep.mubr.bf16.mxu0 0
    %96 = vmatmul.mubr.bf16.gmra.mrb[0].mxu0 %v54
    %v97 = vpop.f32.mrb[0].mxu0
    %v98 = vadd.f32 %v51, %v97
    %v99 = vpop.f32.mrb[0].mxu0
    %v100 = vpop.f32.mrb[0].mxu0
    %v101 = vpop.f32.mrb[0].mxu0
    %102 = vdwg.mxu0
    %v103 = vmax.f32 %v98, 0.0
    %v104 = vpack.c.bf16 %v103, %v103
    %v105 = vld [vmem:[#allocation6 + $0x18] sm:$0xff]
    %v106 = vld [vmem:[#allocation6 + $0x20] sm:$0xff]
    %v107 = vld [vmem:[#allocation6 + $0x28] sm:$0xff]
    %v108 = vld [vmem:[#allocation6 + $0x30] sm:$0xff]
    %v109 = vld [vmem:[#allocation6 + $0x38] sm:$0xff]
    %v110 = vld [vmem:[#allocation6 + $0x40] sm:$0xff]
    %v111 = vld [vmem:[#allocation6 + $0x48] sm:$0xff]
    %v112 = vld [vmem:[#allocation6 + $0x50] sm:$0xff]
    %v113 = vpack.c.bf16 %v106, %v105
    %v114 = vpack.c.bf16 %v108, %v107
    %v115 = vpack.c.bf16 %v110, %v109
    %v116 = vpack.c.bf16 %v112, %v111
    %v117 = vld [vmem:[#allocation6 + $0x58] sm:$0x1]
    %v118 = vlaneseq
    %v119 = vshrl.u32 %v118, 7
    %v120 = vsub.s32 0, %v119
    %v121 = vrot.slane %v117, %v120
    %vm122 = vcmask 523264
    %v124 = vsel %vm122, %v104, 0
    %126 = vmatprep.subr.bf16.mxu0 0
    %127 = vmatpush1.bf16.msra.mxu0 %v113
    %128 = vmatprep.subr.bf16.mxu0 0
    %129 = vmatpush1.bf16.msra.mxu0 %v114
    %130 = vmatprep.subr.bf16.mxu0 0
    %131 = vmatpush1.bf16.msra.mxu0 %v115
    %132 = vmatprep.subr.bf16.mxu0 0
    %133 = vmatpush1.bf16.msra.mxu0 %v116
    %134 = vmatprep.subr.bf16.mxu0 0
    %135 = vmatpush1.bf16.msra.mxu0 0
    %136 = vmatprep.subr.bf16.mxu0 0
    %137 = vmatpush1.bf16.msra.mxu0 0
    %138 = vmatprep.subr.bf16.mxu0 0
    %139 = vmatpush1.bf16.msra.mxu0 0
    %140 = vmatprep.subr.bf16.mxu0 0
    %141 = vmatpush1.bf16.msra.mxu0 0
    %142 = vmatprep.subr.bf16.mxu0 0
    %143 = vmatpush1.bf16.msra.mxu0 0
    %144 = vmatprep.subr.bf16.mxu0 0
    %145 = vmatpush1.bf16.msra.mxu0 0
    %146 = vmatprep.subr.bf16.mxu0 0
    %147 = vmatpush1.bf16.msra.mxu0 0
    %148 = vmatprep.subr.bf16.mxu0 0
    %149 = vmatpush1.bf16.msra.mxu0 0
    %150 = vmatprep.subr.bf16.mxu0 0
    %151 = vmatpush1.bf16.msra.mxu0 0
    %152 = vmatprep.subr.bf16.mxu0 0
    %153 = vmatpush1.bf16.msra.mxu0 0
    %154 = vmatprep.subr.bf16.mxu0 0
    %155 = vmatpush1.bf16.msra.mxu0 0
    %156 = vmatprep.subr.bf16.mxu0 0
    %157 = vmatpush1.bf16.msra.mxu0 0
    %158 = vmatprep.mubr.bf16.mxu0 0
    %159 = vmatmul.mubr.bf16.gmra.mrb[0].mxu0 %v124
    %v160 = vpop.f32.mrb[0].mxu0
    %v161 = vadd.f32 %v121, %v160
    %v162 = vpop.f32.mrb[0].mxu0
    %v163 = vpop.f32.mrb[0].mxu0
    %v164 = vpop.f32.mrb[0].mxu0
    %165 = vdwg.mxu0
    %v166 = vmax.f32 %v161, 0.0
    %v167 = vpack.c.bf16 %v166, %v166
    %v168 = vld [vmem:[#allocation6 + $0x60] sm:$0xff]
    %v169 = vld [vmem:[#allocation6 + $0x68] sm:$0xff]
    %v170 = vld [vmem:[#allocation6 + $0x70] sm:$0xff]
    %v171 = vld [vmem:[#allocation6 + $0x78] sm:$0xff]
    %v172 = vld [vmem:[#allocation6 + $0x80] sm:$0xff]
    %v173 = vld [vmem:[#allocation6 + $0x88] sm:$0xff]
    %v174 = vld [vmem:[#allocation6 + $0x90] sm:$0xff]
    %v175 = vld [vmem:[#allocation6 + $0x98] sm:$0xff]
    %v176 = vld [vmem:[#allocation6 + $0xa0] sm:$0xff]
    %v177 = vld [vmem:[#allocation6 + $0xa8] sm:$0xff]
    %v178 = vld [vmem:[#allocation6 + $0xb0] sm:$0xff]
    %v179 = vld [vmem:[#allocation6 + $0xb8] sm:$0xff]
    %v180 = vld [vmem:[#allocation6 + $0xc0] sm:$0xff]
    %v181 = vld [vmem:[#allocation6 + $0xc8] sm:$0xff]
    %v182 = vld [vmem:[#allocation6 + $0xd0] sm:$0xff]
    %v183 = vld [vmem:[#allocation6 + $0xd8] sm:$0xff]
    %v184 = vpack.c.bf16 %v169, %v168
    %v185 = vpack.c.bf16 %v171, %v170
    %v186 = vpack.c.bf16 %v173, %v172
    %v187 = vpack.c.bf16 %v175, %v174
    %v188 = vpack.c.bf16 %v177, %v176
    %v189 = vpack.c.bf16 %v179, %v178
    %v190 = vpack.c.bf16 %v181, %v180
    %v191 = vpack.c.bf16 %v183, %v182
    %v192 = vld [vmem:[#allocation6 + $0xe0] sm:$0x1f]
    %v193 = vpack.c.bf16 %v192, %v192
    %195 = vrot.lane.b32.xlu0 %v43, 119
    %v196 = vpop.permute.xlu0 %195
    %vm197 = vcmask 39936
    %v199 = vsel %vm197, %v196, 0
    %vm201 = vcmask 1041408
    %vm202 = vcmask 1042432
    %v203 = vsel %vm201, 4294967295, 65535
    %v204 = vsel %vm202, %v203, 0
    %v206 = vand.u32 %v193, %v204
    %208 = vmatprep.subr.bf16.mxu0 0
    %209 = vmatpush1.bf16.msra.mxu0 %v206
    %210 = vmatprep.subr.bf16.mxu0 0
    %211 = vmatpush1.bf16.msra.mxu0 0
    %212 = vmatprep.subr.bf16.mxu0 0
    %213 = vmatpush1.bf16.msra.mxu0 0
    %214 = vmatprep.subr.bf16.mxu0 0
    %215 = vmatpush1.bf16.msra.mxu0 0
    %216 = vmatprep.subr.bf16.mxu0 0
    %217 = vmatpush1.bf16.msra.mxu0 0
    %218 = vmatprep.subr.bf16.mxu0 0
    %219 = vmatpush1.bf16.msra.mxu0 0
    %220 = vmatprep.subr.bf16.mxu0 0
    %221 = vmatpush1.bf16.msra.mxu0 0
    %222 = vmatprep.subr.bf16.mxu0 0
    %223 = vmatpush1.bf16.msra.mxu0 0
    %224 = vmatprep.subr.bf16.mxu0 0
    %225 = vmatpush1.bf16.msra.mxu0 0
    %226 = vmatprep.subr.bf16.mxu0 0
    %227 = vmatpush1.bf16.msra.mxu0 0
    %228 = vmatprep.subr.bf16.mxu0 0
    %229 = vmatpush1.bf16.msra.mxu0 0
    %230 = vmatprep.subr.bf16.mxu0 0
    %231 = vmatpush1.bf16.msra.mxu0 0
    %232 = vmatprep.subr.bf16.mxu0 0
    %233 = vmatpush1.bf16.msra.mxu0 0
    %234 = vmatprep.subr.bf16.mxu0 0
    %235 = vmatpush1.bf16.msra.mxu0 0
    %236 = vmatprep.subr.bf16.mxu0 0
    %237 = vmatpush1.bf16.msra.mxu0 0
    %238 = vmatprep.subr.bf16.mxu0 0
    %239 = vmatpush1.bf16.msra.mxu0 0
    %240 = vmatprep.mubr.bf16.mxu0 0
    %241 = vmatmul.mubr.bf16.gmra.mrb[0].mxu0 %v199
    %v242 = vpop.f32.mrb[0].mxu0
    %v243 = vadd.f32 0.0, %v242
    %v244 = vpop.f32.mrb[0].mxu0
    %v245 = vpop.f32.mrb[0].mxu0
    %v246 = vpop.f32.mrb[0].mxu0
    %247 = vdwg.mxu0
    %248 = vmatprep.subr.bf16.mxu0 0
    %249 = vmatpush1.bf16.msra.mxu0 %v184
    %250 = vmatprep.subr.bf16.mxu0 0
    %251 = vmatpush1.bf16.msra.mxu0 %v185
    %252 = vmatprep.subr.bf16.mxu0 0
    %253 = vmatpush1.bf16.msra.mxu0 %v186
    %254 = vmatprep.subr.bf16.mxu0 0
    %255 = vmatpush1.bf16.msra.mxu0 %v187
    %256 = vmatprep.subr.bf16.mxu0 0
    %257 = vmatpush1.bf16.msra.mxu0 %v188
    %258 = vmatprep.subr.bf16.mxu0 0
    %259 = vmatpush1.bf16.msra.mxu0 %v189
    %260 = vmatprep.subr.bf16.mxu0 0
    %261 = vmatpush1.bf16.msra.mxu0 %v190
    %262 = vmatprep.subr.bf16.mxu0 0
    %263 = vmatpush1.bf16.msra.mxu0 %v191
    %264 = vmatprep.subr.bf16.mxu0 0
    %265 = vmatpush1.bf16.msra.mxu0 0
    %266 = vmatprep.subr.bf16.mxu0 0
    %267 = vmatpush1.bf16.msra.mxu0 0
    %268 = vmatprep.subr.bf16.mxu0 0
    %269 = vmatpush1.bf16.msra.mxu0 0
    %270 = vmatprep.subr.bf16.mxu0 0
    %271 = vmatpush1.bf16.msra.mxu0 0
    %272 = vmatprep.subr.bf16.mxu0 0
    %273 = vmatpush1.bf16.msra.mxu0 0
    %274 = vmatprep.subr.bf16.mxu0 0
    %275 = vmatpush1.bf16.msra.mxu0 0
    %276 = vmatprep.subr.bf16.mxu0 0
    %277 = vmatpush1.bf16.msra.mxu0 0
    %278 = vmatprep.subr.bf16.mxu0 0
    %279 = vmatpush1.bf16.msra.mxu0 0
    %280 = vmatprep.mubr.bf16.mxu0 0
    %281 = vmatmul.mubr.bf16.gmra.mrb[0].mxu0 %v167
    %v282 = vpop.f32.mrb[0].mxu0
    %v283 = vadd.f32 %v243, %v282
    %v284 = vpop.f32.mrb[0].mxu0
    %v285 = vpop.f32.mrb[0].mxu0
    %v286 = vpop.f32.mrb[0].mxu0
    %287 = vdwg.mxu0
    %v288 = vld [vmem:[#allocation6 + $0x108] sm:$0x1]
    %v289 = vlaneseq
    %v290 = vshrl.u32 %v289, 7
    %v291 = vsub.s32 0, %v290
    %v292 = vrot.slane %v288, %v291
    %v293 = vadd.f32 %v283, %v292
    %v294 = vld [vmem:[#allocation6 + $0xe8] sm:$0xff]
    %v295 = vld [vmem:[#allocation6 + $0xf0] sm:$0xff]
    %v296 = vld [vmem:[#allocation6 + $0xf8] sm:$0xff]
    %v297 = vld [vmem:[#allocation6 + $0x100] sm:$0xff]
    %v298 = vpack.c.bf16 %v295, %v294
    %v299 = vpack.c.bf16 %v297, %v296
    %v300 = vpack.c.bf16 %v42, %v42
    %vm301 = vcmask 261120
    %v303 = vsel %vm301, %v300, 0
    %305 = vmatprep.subr.bf16.mxu0 0
    %306 = vmatpush1.bf16.msra.mxu0 %v298
    %307 = vmatprep.subr.bf16.mxu0 0
    %308 = vmatpush1.bf16.msra.mxu0 %v299
    %309 = vmatprep.subr.bf16.mxu0 0
    %310 = vmatpush1.bf16.msra.mxu0 0
    %311 = vmatprep.subr.bf16.mxu0 0
    %312 = vmatpush1.bf16.msra.mxu0 0
    %313 = vmatprep.subr.bf16.mxu0 0
    %314 = vmatpush1.bf16.msra.mxu0 0
    %315 = vmatprep.subr.bf16.mxu0 0
    %316 = vmatpush1.bf16.msra.mxu0 0
    %317 = vmatprep.subr.bf16.mxu0 0
    %318 = vmatpush1.bf16.msra.mxu0 0
    %319 = vmatprep.subr.bf16.mxu0 0
    %320 = vmatpush1.bf16.msra.mxu0 0
    %321 = vmatprep.subr.bf16.mxu0 0
    %322 = vmatpush1.bf16.msra.mxu0 0
    %323 = vmatprep.subr.bf16.mxu0 0
    %324 = vmatpush1.bf16.msra.mxu0 0
    %325 = vmatprep.subr.bf16.mxu0 0
    %326 = vmatpush1.bf16.msra.mxu0 0
    %327 = vmatprep.subr.bf16.mxu0 0
    %328 = vmatpush1.bf16.msra.mxu0 0
    %329 = vmatprep.subr.bf16.mxu0 0
    %330 = vmatpush1.bf16.msra.mxu0 0
    %331 = vmatprep.subr.bf16.mxu0 0
    %332 = vmatpush1.bf16.msra.mxu0 0
    %333 = vmatprep.subr.bf16.mxu0 0
    %334 = vmatpush1.bf16.msra.mxu0 0
    %335 = vmatprep.subr.bf16.mxu0 0
    %336 = vmatpush1.bf16.msra.mxu0 0
    %337 = vmatprep.mubr.bf16.mxu0 0
    %338 = vmatmul.mubr.bf16.gmra.mrb[0].mxu0 %v303
    %v339 = vpop.f32.mrb[0].mxu0
    %v340 = vadd.f32 0.0, %v339
    %v341 = vpop.f32.mrb[0].mxu0
    %v342 = vpop.f32.mrb[0].mxu0
    %v343 = vpop.f32.mrb[0].mxu0
    %344 = vdwg.mxu0
    %v345 = vadd.f32 %v293, %v340
    %v346 = vxor.u32 %v345, 2147483648
    %v347 = vmul.f32 %v346, 1.442695
    %v348 = vpow.pop %v347
    %v349 = vadd.f32 %v348, 1.0
    %v350 = vrcp.pop %v349
    %v351 = vmul.f32 1.0, %v350
    %v352 = vtanh.pop %v345
    %v354 = vrot.slane %v42, 1
    %355 = vrot.lane.b32.xlu0 %v354, 32
    %v356 = vpop.permute.xlu0 %355
    %v358 = vmul.f32 %v351, %v356
    %360 = vrot.lane.b32.xlu0 %v352, 64
    %v361 = vpop.permute.xlu0 %360
    %v363 = vmul.f32 %v351, %v361
    %365 = vrot.lane.b32.xlu0 %v363, 32
    %v366 = vpop.permute.xlu0 %365
    %v368 = vadd.f32 %v358, %v366
    %v369 = vtanh.pop %v368
    %371 = vrot.lane.b32.xlu0 %v369, 64
    %v372 = vpop.permute.xlu0 %371
    %v374 = vmul.f32 %v351, %v372
    %376 = vrot.lane.b32.xlu0 %v374, 32
    %v377 = vpop.permute.xlu0 %376
    %vm379 = vcmask 253952
    %380 = vst.msk [vmem:[#allocation2] sm:$0x1] %vm379, %v377
    %v381 = vpack.c.bf16 %v374, %v374
    %383 = vrot.lane.b32.xlu0 %v381, 32
    %v384 = vpop.permute.xlu0 %383
    %v386 = vsel %vm301, %v384, 0
    %388 = vmatprep.subr.bf16.mxu0 0
    %389 = vmatpush1.bf16.msra.mxu0 %v298
    %390 = vmatprep.subr.bf16.mxu0 0
    %391 = vmatpush1.bf16.msra.mxu0 %v299
    %392 = vmatprep.subr.bf16.mxu0 0
    %393 = vmatpush1.bf16.msra.mxu0 0
    %394 = vmatprep.subr.bf16.mxu0 0
    %395 = vmatpush1.bf16.msra.mxu0 0
    %396 = vmatprep.subr.bf16.mxu0 0
    %397 = vmatpush1.bf16.msra.mxu0 0
    %398 = vmatprep.subr.bf16.mxu0 0
    %399 = vmatpush1.bf16.msra.mxu0 0
    %400 = vmatprep.subr.bf16.mxu0 0
    %401 = vmatpush1.bf16.msra.mxu0 0
    %402 = vmatprep.subr.bf16.mxu0 0
    %403 = vmatpush1.bf16.msra.mxu0 0
    %404 = vmatprep.subr.bf16.mxu0 0
    %405 = vmatpush1.bf16.msra.mxu0 0
    %406 = vmatprep.subr.bf16.mxu0 0
    %407 = vmatpush1.bf16.msra.mxu0 0
    %408 = vmatprep.subr.bf16.mxu0 0
    %409 = vmatpush1.bf16.msra.mxu0 0
    %410 = vmatprep.subr.bf16.mxu0 0
    %411 = vmatpush1.bf16.msra.mxu0 0
    %412 = vmatprep.subr.bf16.mxu0 0
    %413 = vmatpush1.bf16.msra.mxu0 0
    %414 = vmatprep.subr.bf16.mxu0 0
    %415 = vmatpush1.bf16.msra.mxu0 0
    %416 = vmatprep.subr.bf16.mxu0 0
    %417 = vmatpush1.bf16.msra.mxu0 0
    %418 = vmatprep.subr.bf16.mxu0 0
    %419 = vmatpush1.bf16.msra.mxu0 0
    %420 = vmatprep.mubr.bf16.mxu0 0
    %421 = vmatmul.mubr.bf16.gmra.mrb[0].mxu0 %v386
    %v422 = vpop.f32.mrb[0].mxu0
    %v423 = vadd.f32 0.0, %v422
    %v424 = vpop.f32.mrb[0].mxu0
    %v425 = vpop.f32.mrb[0].mxu0
    %v426 = vpop.f32.mrb[0].mxu0
    %427 = vdwg.mxu0
    %v429 = vrot.slane %v423, 7
    %v431 = vadd.f32 %v293, %v429
    %v432 = vxor.u32 %v431, 2147483648
    %v433 = vmul.f32 %v432, 1.442695
    %v434 = vpow.pop %v433
    %v435 = vadd.f32 %v434, 1.0
    %v436 = vrcp.pop %v435
    %v437 = vmul.f32 1.0, %v436
    %v438 = vtanh.pop %v431
    %v440 = vrot.slane %v368, 7
    %v442 = vmul.f32 %v437, %v440
    %444 = vrot.lane.b32.xlu0 %v438, 64
    %v445 = vpop.permute.xlu0 %444
    %v447 = vmul.f32 %v437, %v445
    %449 = vrot.lane.b32.xlu0 %v447, 32
    %v450 = vpop.permute.xlu0 %449
    %v452 = vadd.f32 %v442, %v450
    %v453 = vtanh.pop %v452
    %455 = vrot.lane.b32.xlu0 %v453, 64
    %v456 = vpop.permute.xlu0 %455
    %v458 = vmul.f32 %v437, %v456
    %460 = vrot.lane.b32.xlu0 %v458, 32
    %v461 = vpop.permute.xlu0 %460
    %vm463 = vcmask 254977
    %464 = vst.msk [vmem:[#allocation2] sm:$0x2] %vm463, %v461
    %v465 = vpack.c.bf16 %v458, %v458
    %v467 = vshrl.u32 %v465, 16
    %469 = vrot.lane.b32.xlu0 %v467, 32
    %v470 = vpop.permute.xlu0 %469
    %v472 = vsel %vm301, %v470, 0
    %474 = vmatprep.subr.bf16.mxu0 0
    %475 = vmatpush1.bf16.msra.mxu0 %v298
    %476 = vmatprep.subr.bf16.mxu0 0
    %477 = vmatpush1.bf16.msra.mxu0 %v299
    %478 = vmatprep.subr.bf16.mxu0 0
    %479 = vmatpush1.bf16.msra.mxu0 0
    %480 = vmatprep.subr.bf16.mxu0 0
    %481 = vmatpush1.bf16.msra.mxu0 0
    %482 = vmatprep.subr.bf16.mxu0 0
    %483 = vmatpush1.bf16.msra.mxu0 0
    %484 = vmatprep.subr.bf16.mxu0 0
    %485 = vmatpush1.bf16.msra.mxu0 0
    %486 = vmatprep.subr.bf16.mxu0 0
    %487 = vmatpush1.bf16.msra.mxu0 0
    %488 = vmatprep.subr.bf16.mxu0 0
    %489 = vmatpush1.bf16.msra.mxu0 0
    %490 = vmatprep.subr.bf16.mxu0 0
    %491 = vmatpush1.bf16.msra.mxu0 0
    %492 = vmatprep.subr.bf16.mxu0 0
    %493 = vmatpush1.bf16.msra.mxu0 0
    %494 = vmatprep.subr.bf16.mxu0 0
    %495 = vmatpush1.bf16.msra.mxu0 0
    %496 = vmatprep.subr.bf16.mxu0 0
    %497 = vmatpush1.bf16.msra.mxu0 0
    %498 = vmatprep.subr.bf16.mxu0 0
    %499 = vmatpush1.bf16.msra.mxu0 0
    %500 = vmatprep.subr.bf16.mxu0 0
    %501 = vmatpush1.bf16.msra.mxu0 0
    %502 = vmatprep.subr.bf16.mxu0 0
    %503 = vmatpush1.bf16.msra.mxu0 0
    %504 = vmatprep.subr.bf16.mxu0 0
    %505 = vmatpush1.bf16.msra.mxu0 0
    %506 = vmatprep.mubr.bf16.mxu0 0
    %507 = vmatmul.mubr.bf16.gmra.mrb[0].mxu0 %v472
    %v508 = vpop.f32.mrb[0].mxu0
    %v509 = vadd.f32 0.0, %v508
    %v510 = vpop.f32.mrb[0].mxu0
    %v511 = vpop.f32.mrb[0].mxu0
    %v512 = vpop.f32.mrb[0].mxu0
    %513 = vdwg.mxu0
    %v515 = vrot.slane %v509, 6
    %v517 = vadd.f32 %v293, %v515
    %v518 = vxor.u32 %v517, 2147483648
    %v519 = vmul.f32 %v518, 1.442695
    %v520 = vpow.pop %v519
    %v521 = vadd.f32 %v520, 1.0
    %v522 = vrcp.pop %v521
    %v523 = vmul.f32 1.0, %v522
    %v524 = vtanh.pop %v517
    %v526 = vrot.slane %v452, 7
    %v528 = vmul.f32 %v523, %v526
    %530 = vrot.lane.b32.xlu0 %v524, 64
    %v531 = vpop.permute.xlu0 %530
    %v533 = vmul.f32 %v523, %v531
    %535 = vrot.lane.b32.xlu0 %v533, 32
    %v536 = vpop.permute.xlu0 %535
    %v538 = vadd.f32 %v528, %v536
    %v539 = vtanh.pop %v538
    %541 = vrot.lane.b32.xlu0 %v539, 64
    %v542 = vpop.permute.xlu0 %541
    %v544 = vmul.f32 %v523, %v542
    %546 = vrot.lane.b32.xlu0 %v544, 32
    %v547 = vpop.permute.xlu0 %546
    %vm549 = vcmask 256002
    %550 = vst.msk [vmem:[#allocation2] sm:$0x4] %vm549, %v547
    %v551 = vpack.c.bf16 %v544, %v544
    %v553 = vrot.slane %v551, 1
    %554 = vrot.lane.b32.xlu0 %v553, 32
    %v555 = vpop.permute.xlu0 %554
    %v557 = vsel %vm301, %v555, 0
    %559 = vmatprep.subr.bf16.mxu0 0
    %560 = vmatpush1.bf16.msra.mxu0 %v298
    %561 = vmatprep.subr.bf16.mxu0 0
    %562 = vmatpush1.bf16.msra.mxu0 %v299
    %563 = vmatprep.subr.bf16.mxu0 0
    %564 = vmatpush1.bf16.msra.mxu0 0
    %565 = vmatprep.subr.bf16.mxu0 0
    %566 = vmatpush1.bf16.msra.mxu0 0
    %567 = vmatprep.subr.bf16.mxu0 0
    %568 = vmatpush1.bf16.msra.mxu0 0
    %569 = vmatprep.subr.bf16.mxu0 0
    %570 = vmatpush1.bf16.msra.mxu0 0
    %571 = vmatprep.subr.bf16.mxu0 0
    %572 = vmatpush1.bf16.msra.mxu0 0
    %573 = vmatprep.subr.bf16.mxu0 0
    %574 = vmatpush1.bf16.msra.mxu0 0
    %575 = vmatprep.subr.bf16.mxu0 0
    %576 = vmatpush1.bf16.msra.mxu0 0
    %577 = vmatprep.subr.bf16.mxu0 0
    %578 = vmatpush1.bf16.msra.mxu0 0
    %579 = vmatprep.subr.bf16.mxu0 0
    %580 = vmatpush1.bf16.msra.mxu0 0
    %581 = vmatprep.subr.bf16.mxu0 0
    %582 = vmatpush1.bf16.msra.mxu0 0
    %583 = vmatprep.subr.bf16.mxu0 0
    %584 = vmatpush1.bf16.msra.mxu0 0
    %585 = vmatprep.subr.bf16.mxu0 0
    %586 = vmatpush1.bf16.msra.mxu0 0
    %587 = vmatprep.subr.bf16.mxu0 0
    %588 = vmatpush1.bf16.msra.mxu0 0
    %589 = vmatprep.subr.bf16.mxu0 0
    %590 = vmatpush1.bf16.msra.mxu0 0
    %591 = vmatprep.mubr.bf16.mxu0 0
    %592 = vmatmul.mubr.bf16.gmra.mrb[0].mxu0 %v557
    %v593 = vpop.f32.mrb[0].mxu0
    %v594 = vadd.f32 0.0, %v593
    %v595 = vpop.f32.mrb[0].mxu0
    %v596 = vpop.f32.mrb[0].mxu0
    %v597 = vpop.f32.mrb[0].mxu0
    %598 = vdwg.mxu0
    %v600 = vrot.slane %v594, 5
    %v602 = vadd.f32 %v293, %v600
    %v603 = vxor.u32 %v602, 2147483648
    %v604 = vmul.f32 %v603, 1.442695
    %v605 = vpow.pop %v604
    %v606 = vadd.f32 %v605, 1.0
    %v607 = vrcp.pop %v606
    %v608 = vmul.f32 1.0, %v607
    %v609 = vtanh.pop %v602
    %v611 = vrot.slane %v538, 7
    %v613 = vmul.f32 %v608, %v611
    %615 = vrot.lane.b32.xlu0 %v609, 64
    %v616 = vpop.permute.xlu0 %615
    %v618 = vmul.f32 %v608, %v616
    %620 = vrot.lane.b32.xlu0 %v618, 32
    %v621 = vpop.permute.xlu0 %620
    %v623 = vadd.f32 %v613, %v621
    %v624 = vtanh.pop %v623
    %626 = vrot.lane.b32.xlu0 %v624, 64
    %v627 = vpop.permute.xlu0 %626
    %v629 = vmul.f32 %v608, %v627
    %631 = vrot.lane.b32.xlu0 %v629, 32
    %v632 = vpop.permute.xlu0 %631
    %vm634 = vcmask 257027
    %635 = vst.msk [vmem:[#allocation2] sm:$0x8] %vm634, %v632
    %v636 = vpack.c.bf16 %v629, %v629
    %v638 = vshrl.u32 %v636, 16
    %v640 = vrot.slane %v638, 1
    %641 = vrot.lane.b32.xlu0 %v640, 32
    %v642 = vpop.permute.xlu0 %641
    %v644 = vsel %vm301, %v642, 0
    %646 = vmatprep.subr.bf16.mxu0 0
    %647 = vmatpush1.bf16.msra.mxu0 %v298
    %648 = vmatprep.subr.bf16.mxu0 0
    %649 = vmatpush1.bf16.msra.mxu0 %v299
    %650 = vmatprep.subr.bf16.mxu0 0
    %651 = vmatpush1.bf16.msra.mxu0 0
    %652 = vmatprep.subr.bf16.mxu0 0
    %653 = vmatpush1.bf16.msra.mxu0 0
    %654 = vmatprep.subr.bf16.mxu0 0
    %655 = vmatpush1.bf16.msra.mxu0 0
    %656 = vmatprep.subr.bf16.mxu0 0
    %657 = vmatpush1.bf16.msra.mxu0 0
    %658 = vmatprep.subr.bf16.mxu0 0
    %659 = vmatpush1.bf16.msra.mxu0 0
    %660 = vmatprep.subr.bf16.mxu0 0
    %661 = vmatpush1.bf16.msra.mxu0 0
    %662 = vmatprep.subr.bf16.mxu0 0
    %663 = vmatpush1.bf16.msra.mxu0 0
    %664 = vmatprep.subr.bf16.mxu0 0
    %665 = vmatpush1.bf16.msra.mxu0 0
    %666 = vmatprep.subr.bf16.mxu0 0
    %667 = vmatpush1.bf16.msra.mxu0 0
    %668 = vmatprep.subr.bf16.mxu0 0
    %669 = vmatpush1.bf16.msra.mxu0 0
    %670 = vmatprep.subr.bf16.mxu0 0
    %671 = vmatpush1.bf16.msra.mxu0 0
    %672 = vmatprep.subr.bf16.mxu0 0
    %673 = vmatpush1.bf16.msra.mxu0 0
    %674 = vmatprep.subr.bf16.mxu0 0
    %675 = vmatpush1.bf16.msra.mxu0 0
    %676 = vmatprep.subr.bf16.mxu0 0
    %677 = vmatpush1.bf16.msra.mxu0 0
    %678 = vmatprep.mubr.bf16.mxu0 0
    %679 = vmatmul.mubr.bf16.gmra.mrb[0].mxu0 %v644
    %v680 = vpop.f32.mrb[0].mxu0
    %v681 = vadd.f32 0.0, %v680
    %v682 = vpop.f32.mrb[0].mxu0
    %v683 = vpop.f32.mrb[0].mxu0
    %v684 = vpop.f32.mrb[0].mxu0
    %685 = vdwg.mxu0
    %v687 = vrot.slane %v681, 4
    %v689 = vadd.f32 %v293, %v687
    %v690 = vxor.u32 %v689, 2147483648
    %v691 = vmul.f32 %v690, 1.442695
    %v692 = vpow.pop %v691
    %v693 = vadd.f32 %v692, 1.0
    %v694 = vrcp.pop %v693
    %v695 = vmul.f32 1.0, %v694
    %v696 = vtanh.pop %v689
    %v698 = vrot.slane %v623, 7
    %v700 = vmul.f32 %v695, %v698
    %702 = vrot.lane.b32.xlu0 %v696, 64
    %v703 = vpop.permute.xlu0 %702
    %v705 = vmul.f32 %v695, %v703
    %707 = vrot.lane.b32.xlu0 %v705, 32
    %v708 = vpop.permute.xlu0 %707
    %v710 = vadd.f32 %v700, %v708
    %v711 = vtanh.pop %v710
    %713 = vrot.lane.b32.xlu0 %v711, 64
    %v714 = vpop.permute.xlu0 %713
    %v716 = vmul.f32 %v695, %v714
    %718 = vrot.lane.b32.xlu0 %v716, 32
    %v719 = vpop.permute.xlu0 %718
    %vm721 = vcmask 258052
    %722 = vst.msk [vmem:[#allocation2] sm:$0x10] %vm721, %v719
    %v723 = vpack.c.bf16 %v716, %v716
    %v725 = vrot.slane %v723, 2
    %726 = vrot.lane.b32.xlu0 %v725, 32
    %v727 = vpop.permute.xlu0 %726
    %v729 = vsel %vm301, %v727, 0
    %731 = vmatprep.subr.bf16.mxu0 0
    %732 = vmatpush1.bf16.msra.mxu0 %v298
    %733 = vmatprep.subr.bf16.mxu0 0
    %734 = vmatpush1.bf16.msra.mxu0 %v299
    %735 = vmatprep.subr.bf16.mxu0 0
    %736 = vmatpush1.bf16.msra.mxu0 0
    %737 = vmatprep.subr.bf16.mxu0 0
    %738 = vmatpush1.bf16.msra.mxu0 0
    %739 = vmatprep.subr.bf16.mxu0 0
    %740 = vmatpush1.bf16.msra.mxu0 0
    %741 = vmatprep.subr.bf16.mxu0 0
    %742 = vmatpush1.bf16.msra.mxu0 0
    %743 = vmatprep.subr.bf16.mxu0 0
    %744 = vmatpush1.bf16.msra.mxu0 0
    %745 = vmatprep.subr.bf16.mxu0 0
    %746 = vmatpush1.bf16.msra.mxu0 0
    %747 = vmatprep.subr.bf16.mxu0 0
    %748 = vmatpush1.bf16.msra.mxu0 0
    %749 = vmatprep.subr.bf16.mxu0 0
    %750 = vmatpush1.bf16.msra.mxu0 0
    %751 = vmatprep.subr.bf16.mxu0 0
    %752 = vmatpush1.bf16.msra.mxu0 0
    %753 = vmatprep.subr.bf16.mxu0 0
    %754 = vmatpush1.bf16.msra.mxu0 0
    %755 = vmatprep.subr.bf16.mxu0 0
    %756 = vmatpush1.bf16.msra.mxu0 0
    %757 = vmatprep.subr.bf16.mxu0 0
    %758 = vmatpush1.bf16.msra.mxu0 0
    %759 = vmatprep.subr.bf16.mxu0 0
    %760 = vmatpush1.bf16.msra.mxu0 0
    %761 = vmatprep.subr.bf16.mxu0 0
    %762 = vmatpush1.bf16.msra.mxu0 0
    %763 = vmatprep.mubr.bf16.mxu0 0
    %764 = vmatmul.mubr.bf16.gmra.mrb[0].mxu0 %v729
    %v765 = vpop.f32.mrb[0].mxu0
    %v766 = vadd.f32 0.0, %v765
    %v767 = vpop.f32.mrb[0].mxu0
    %v768 = vpop.f32.mrb[0].mxu0
    %v769 = vpop.f32.mrb[0].mxu0
    %770 = vdwg.mxu0
    %v772 = vrot.slane %v766, 3
    %v774 = vadd.f32 %v293, %v772
    %v775 = vxor.u32 %v774, 2147483648
    %v776 = vmul.f32 %v775, 1.442695
    %v777 = vpow.pop %v776
    %v778 = vadd.f32 %v777, 1.0
    %v779 = vrcp.pop %v778
    %v780 = vmul.f32 1.0, %v779
    %v781 = vtanh.pop %v774
    %v783 = vrot.slane %v710, 7
    %v785 = vmul.f32 %v780, %v783
    %787 = vrot.lane.b32.xlu0 %v781, 64
    %v788 = vpop.permute.xlu0 %787
    %v790 = vmul.f32 %v780, %v788
    %792 = vrot.lane.b32.xlu0 %v790, 32
    %v793 = vpop.permute.xlu0 %792
    %v795 = vadd.f32 %v785, %v793
    %v796 = vtanh.pop %v795
    %798 = vrot.lane.b32.xlu0 %v796, 64
    %v799 = vpop.permute.xlu0 %798
    %v801 = vmul.f32 %v780, %v799
    %803 = vrot.lane.b32.xlu0 %v801, 32
    %v804 = vpop.permute.xlu0 %803
    %vm806 = vcmask 259077
    %807 = vst.msk [vmem:[#allocation2] sm:$0x20] %vm806, %v804
    %v808 = vpack.c.bf16 %v801, %v801
    %v810 = vshrl.u32 %v808, 16
    %v812 = vrot.slane %v810, 2
    %813 = vrot.lane.b32.xlu0 %v812, 32
    %v814 = vpop.permute.xlu0 %813
    %v816 = vsel %vm301, %v814, 0
    %818 = vmatprep.subr.bf16.mxu0 0
    %819 = vmatpush1.bf16.msra.mxu0 %v298
    %820 = vmatprep.subr.bf16.mxu0 0
    %821 = vmatpush1.bf16.msra.mxu0 %v299
    %822 = vmatprep.subr.bf16.mxu0 0
    %823 = vmatpush1.bf16.msra.mxu0 0
    %824 = vmatprep.subr.bf16.mxu0 0
    %825 = vmatpush1.bf16.msra.mxu0 0
    %826 = vmatprep.subr.bf16.mxu0 0
    %827 = vmatpush1.bf16.msra.mxu0 0
    %828 = vmatprep.subr.bf16.mxu0 0
    %829 = vmatpush1.bf16.msra.mxu0 0
    %830 = vmatprep.subr.bf16.mxu0 0
    %831 = vmatpush1.bf16.msra.mxu0 0
    %832 = vmatprep.subr.bf16.mxu0 0
    %833 = vmatpush1.bf16.msra.mxu0 0
    %834 = vmatprep.subr.bf16.mxu0 0
    %835 = vmatpush1.bf16.msra.mxu0 0
    %836 = vmatprep.subr.bf16.mxu0 0
    %837 = vmatpush1.bf16.msra.mxu0 0
    %838 = vmatprep.subr.bf16.mxu0 0
    %839 = vmatpush1.bf16.msra.mxu0 0
    %840 = vmatprep.subr.bf16.mxu0 0
    %841 = vmatpush1.bf16.msra.mxu0 0
    %842 = vmatprep.subr.bf16.mxu0 0
    %843 = vmatpush1.bf16.msra.mxu0 0
    %844 = vmatprep.subr.bf16.mxu0 0
    %845 = vmatpush1.bf16.msra.mxu0 0
    %846 = vmatprep.subr.bf16.mxu0 0
    %847 = vmatpush1.bf16.msra.mxu0 0
    %848 = vmatprep.subr.bf16.mxu0 0
    %849 = vmatpush1.bf16.msra.mxu0 0
    %850 = vmatprep.mubr.bf16.mxu0 0
    %851 = vmatmul.mubr.bf16.gmra.mrb[0].mxu0 %v816
    %v852 = vpop.f32.mrb[0].mxu0
    %v853 = vadd.f32 0.0, %v852
    %v854 = vpop.f32.mrb[0].mxu0
    %v855 = vpop.f32.mrb[0].mxu0
    %v856 = vpop.f32.mrb[0].mxu0
    %857 = vdwg.mxu0
    %v859 = vrot.slane %v853, 2
    %v861 = vadd.f32 %v293, %v859
    %v862 = vxor.u32 %v861, 2147483648
    %v863 = vmul.f32 %v862, 1.442695
    %v864 = vpow.pop %v863
    %v865 = vadd.f32 %v864, 1.0
    %v866 = vrcp.pop %v865
    %v867 = vmul.f32 1.0, %v866
    %v868 = vtanh.pop %v861
    %v870 = vrot.slane %v795, 7
    %v872 = vmul.f32 %v867, %v870
    %874 = vrot.lane.b32.xlu0 %v868, 64
    %v875 = vpop.permute.xlu0 %874
    %v877 = vmul.f32 %v867, %v875
    %879 = vrot.lane.b32.xlu0 %v877, 32
    %v880 = vpop.permute.xlu0 %879
    %v882 = vadd.f32 %v872, %v880
    %v883 = vtanh.pop %v882
    %885 = vrot.lane.b32.xlu0 %v883, 64
    %v886 = vpop.permute.xlu0 %885
    %v888 = vmul.f32 %v867, %v886
    %890 = vrot.lane.b32.xlu0 %v888, 32
    %v891 = vpop.permute.xlu0 %890
    %vm893 = vcmask 260102
    %894 = vst.msk [vmem:[#allocation2] sm:$0x40] %vm893, %v891
    %v895 = vpack.c.bf16 %v888, %v888
    %v897 = vrot.slane %v895, 3
    %898 = vrot.lane.b32.xlu0 %v897, 32
    %v899 = vpop.permute.xlu0 %898
    %v901 = vsel %vm301, %v899, 0
    %903 = vmatprep.subr.bf16.mxu0 0
    %904 = vmatpush1.bf16.msra.mxu0 %v298
    %905 = vmatprep.subr.bf16.mxu0 0
    %906 = vmatpush1.bf16.msra.mxu0 %v299
    %907 = vmatprep.subr.bf16.mxu0 0
    %908 = vmatpush1.bf16.msra.mxu0 0
    %909 = vmatprep.subr.bf16.mxu0 0
    %910 = vmatpush1.bf16.msra.mxu0 0
    %911 = vmatprep.subr.bf16.mxu0 0
    %912 = vmatpush1.bf16.msra.mxu0 0
    %913 = vmatprep.subr.bf16.mxu0 0
    %914 = vmatpush1.bf16.msra.mxu0 0
    %915 = vmatprep.subr.bf16.mxu0 0
    %916 = vmatpush1.bf16.msra.mxu0 0
    %917 = vmatprep.subr.bf16.mxu0 0
    %918 = vmatpush1.bf16.msra.mxu0 0
    %919 = vmatprep.subr.bf16.mxu0 0
    %920 = vmatpush1.bf16.msra.mxu0 0
    %921 = vmatprep.subr.bf16.mxu0 0
    %922 = vmatpush1.bf16.msra.mxu0 0
    %923 = vmatprep.subr.bf16.mxu0 0
    %924 = vmatpush1.bf16.msra.mxu0 0
    %925 = vmatprep.subr.bf16.mxu0 0
    %926 = vmatpush1.bf16.msra.mxu0 0
    %927 = vmatprep.subr.bf16.mxu0 0
    %928 = vmatpush1.bf16.msra.mxu0 0
    %929 = vmatprep.subr.bf16.mxu0 0
    %930 = vmatpush1.bf16.msra.mxu0 0
    %931 = vmatprep.subr.bf16.mxu0 0
    %932 = vmatpush1.bf16.msra.mxu0 0
    %933 = vmatprep.subr.bf16.mxu0 0
    %934 = vmatpush1.bf16.msra.mxu0 0
    %935 = vmatprep.mubr.bf16.mxu0 0
    %936 = vmatmul.mubr.bf16.gmra.mrb[0].mxu0 %v901
    %v937 = vpop.f32.mrb[0].mxu0
    %v938 = vadd.f32 0.0, %v937
    %v939 = vpop.f32.mrb[0].mxu0
    %v940 = vpop.f32.mrb[0].mxu0
    %v941 = vpop.f32.mrb[0].mxu0
    %942 = vdwg.mxu0
    %v944 = vrot.slane %v938, 1
    %v946 = vadd.f32 %v293, %v944
    %v947 = vxor.u32 %v946, 2147483648
    %v948 = vmul.f32 %v947, 1.442695
    %v949 = vpow.pop %v948
    %v950 = vadd.f32 %v949, 1.0
    %v951 = vrcp.pop %v950
    %v952 = vmul.f32 1.0, %v951
    %v953 = vtanh.pop %v946
    %v955 = vrot.slane %v882, 7
    %v957 = vmul.f32 %v952, %v955
    %959 = vrot.lane.b32.xlu0 %v953, 64
    %v960 = vpop.permute.xlu0 %959
    %v962 = vmul.f32 %v952, %v960
    %964 = vrot.lane.b32.xlu0 %v962, 32
    %v965 = vpop.permute.xlu0 %964
    %v967 = vadd.f32 %v957, %v965
    %v968 = vtanh.pop %v967
    %970 = vrot.lane.b32.xlu0 %v968, 64
    %v971 = vpop.permute.xlu0 %970
    %v973 = vmul.f32 %v952, %v971
    %975 = vrot.lane.b32.xlu0 %v973, 32
    %v976 = vpop.permute.xlu0 %975
    %vm978 = vcmask 261127
    %979 = vst.msk [vmem:[#allocation2] sm:$0x80] %vm978, %v976
    %v980 = vld [vmem:[#allocation2] sm:$0xff]
    %v981 = vpack.c.bf16 %v980, %v980
    %v982 = vld [vmem:[#allocation6 + $0x110] sm:$0xff]
    %v983 = vld [vmem:[#allocation6 + $0x118] sm:$0xff]
    %v984 = vld [vmem:[#allocation6 + $0x120] sm:$0xff]
    %v985 = vld [vmem:[#allocation6 + $0x128] sm:$0xff]
    %v986 = vpack.c.bf16 %v983, %v982
    %v987 = vpack.c.bf16 %v985, %v984
    %v988 = vld [vmem:[#allocation6 + $0x130] sm:$0x1]
    %v989 = vlaneseq
    %v990 = vshrl.u32 %v989, 7
    %v991 = vsub.s32 0, %v990
    %v992 = vrot.slane %v988, %v991
    %v994 = vsel %vm301, %v981, 0
    %996 = vmatprep.subr.bf16.mxu0 0
    %997 = vmatpush1.bf16.msra.mxu0 %v986
    %998 = vmatprep.subr.bf16.mxu0 0
    %999 = vmatpush1.bf16.msra.mxu0 %v987
    %1000 = vmatprep.subr.bf16.mxu0 0
    %1001 = vmatpush1.bf16.msra.mxu0 0
    %1002 = vmatprep.subr.bf16.mxu0 0
    %1003 = vmatpush1.bf16.msra.mxu0 0
    %1004 = vmatprep.subr.bf16.mxu0 0
    %1005 = vmatpush1.bf16.msra.mxu0 0
    %1006 = vmatprep.subr.bf16.mxu0 0
    %1007 = vmatpush1.bf16.msra.mxu0 0
    %1008 = vmatprep.subr.bf16.mxu0 0
    %1009 = vmatpush1.bf16.msra.mxu0 0
    %1010 = vmatprep.subr.bf16.mxu0 0
    %1011 = vmatpush1.bf16.msra.mxu0 0
    %1012 = vmatprep.subr.bf16.mxu0 0
    %1013 = vmatpush1.bf16.msra.mxu0 0
    %1014 = vmatprep.subr.bf16.mxu0 0
    %1015 = vmatpush1.bf16.msra.mxu0 0
    %1016 = vmatprep.subr.bf16.mxu0 0
    %1017 = vmatpush1.bf16.msra.mxu0 0
    %1018 = vmatprep.subr.bf16.mxu0 0
    %1019 = vmatpush1.bf16.msra.mxu0 0
    %1020 = vmatprep.subr.bf16.mxu0 0
    %1021 = vmatpush1.bf16.msra.mxu0 0
    %1022 = vmatprep.subr.bf16.mxu0 0
    %1023 = vmatpush1.bf16.msra.mxu0 0
    %1024 = vmatprep.subr.bf16.mxu0 0
    %1025 = vmatpush1.bf16.msra.mxu0 0
    %1026 = vmatprep.subr.bf16.mxu0 0
    %1027 = vmatpush1.bf16.msra.mxu0 0
    %1028 = vmatprep.mubr.bf16.mxu0 0
    %1029 = vmatmul.mubr.bf16.gmra.mrb[0].mxu0 %v994
    %v1030 = vpop.f32.mrb[0].mxu0
    %v1031 = vadd.f32 %v992, %v1030
    %v1032 = vpop.f32.mrb[0].mxu0
    %v1033 = vpop.f32.mrb[0].mxu0
    %v1034 = vpop.f32.mrb[0].mxu0
    %1035 = vdwg.mxu0
    %1036 = vst [vmem:[#allocation8] sm:$0xff] %v1031
    %1037 = vst.msk [vmem:[#allocation8 + $0x1] sm:$0x80] %vm978, %v976
    %1039 = vrot.lane.b32.xlu0 %v967, 96
    %v1040 = vpop.permute.xlu0 %1039
    %1042 = vst.msk [vmem:[#allocation8 + $0x2] sm:$0x80] %vm978, %v1040
    // Predicated region
    $region18: #{tpu_custom_call.1} parent=1 // pred_check
      _
    $region19: #{tpu_custom_call.1} parent=1 // pred_check_branch
      %1044 = sbr.rel (0) target = $region21
    $region20: #{tpu_custom_call.1} parent=1 // pred_region
      %s1046 = ssub.s32 256, 256
      %1047 = vsyncadd [#allocation5], %s1046
      %s1048 = sshll.u32 [#allocation8], 4
      %s1049 = int_to_ptr.vmem [resolvable:$true] %s1048
      %1054 = dma.vmem_to_hbm [thread:$0]  %s1049, 256, %s2, [#allocation5], 128, 128, 8
    $region21: #{tpu_custom_call.1} parent=1 // pred_fallthru
      _
    // Predicated region
    $region22: #{tpu_custom_call.1} parent=1 // pred_check
      _
    $region23: #{tpu_custom_call.1} parent=1 // pred_check_branch
      %1056 = sbr.rel (0) target = $region25
    $region24: #{tpu_custom_call.1} parent=1 // pred_region
      %1057 = dma.done [#allocation5], 256
    $region25: #{tpu_custom_call.1} parent=1 // pred_fallthru
      _
    %1058 = vsyncpa [#allocation4], 1
    %1059 = vsyncpa [#allocation7], 1
    %1060 = vsyncpa [#allocation5], 1

</llo_original>
